<compile_context>
chip_gen: v6e
topology: v6e:2x2x1
jax: 0.10.0
libtpu: 0.0.40
codegen_flags: <defaults>
</compile_context>

<pallas_src>
import functools

import jax
import jax.numpy as jnp
from jax.experimental import pallas as pl
from jax.experimental.pallas import tpu as pltpu

_LANE = 128
_MIB = 1024 * 1024


def _sublane_quantum(dtype) -> int:
    return {4: 8, 2: 16, 1: 32}.get(jnp.dtype(dtype).itemsize, 8)


def _num_tensorcores() -> int:
    """TensorCores per chip: 2 on v7x, 1 on v5e/v6e (defensive fallbacks)."""
    try:
        info = pltpu.get_tpu_info()
        for name in ("num_tensorcores", "tensorcores_per_chip", "num_cores",
                     "cores_per_chip"):
            v = getattr(info, name, None)
            if isinstance(v, int) and v >= 1:
                return v
    except Exception:
        pass
    try:
        kind = jax.devices()[0].device_kind.lower()
        if "v7" in kind:
            return 2
    except Exception:
        pass
    return 1


def _vmem_capacity_bytes() -> int:
    try:
        v = int(getattr(pltpu.get_tpu_info(), "vmem_capacity_bytes", 0) or 0)
        if v > 0:
            return v
    except Exception:
        pass
    try:
        kind = jax.devices()[0].device_kind.lower()
        if "v7" not in kind:
            return 128 * _MIB          # v4/v5e/v6e: 128 MiB per core
    except Exception:
        pass
    return 64 * _MIB                    # conservative (v7x per-TC)


def _dice_partial_kernel(pred_ref, gt_ref, inter_ref, union_ref, *,
                         rows_total, rows_per_block, chunks_per_split):
    s = pl.program_id(1)          # reduction split (parallel)
    j = pl.program_id(2)          # row-chunk within the split (arbitrary)

    # Output blocks are resident across j -> they ARE the accumulators.
    @pl.when(j == 0)
    def _():
        inter_ref[...] = jnp.zeros_like(inter_ref)
        union_ref[...] = jnp.zeros_like(union_ref)

    chunk = s * chunks_per_split + j
    valid = rows_total - chunk * rows_per_block   # valid rows in this block

    p = pred_ref[0].astype(jnp.float32)           # (rows_per_block, 128)
    g = gt_ref[0].astype(jnp.float32)

    def accumulate(pp, gg):
        # Reduce to a single (1, 128) lane-wise partial per step: mostly
        # vreg-add VPU work, one tiny intra-vreg sublane reduce; acc traffic
        # is a single (1,128) read-modify-write per output per step.
        inter_ref[...] = inter_ref[...] + jnp.sum(pp * gg, axis=0, keepdims=True)
        union_ref[...] = union_ref[...] + jnp.sum(pp + gg, axis=0, keepdims=True)

    # Full block: pure unmasked path (the overwhelmingly common case).
    @pl.when(valid >= rows_per_block)
    def _():
        accumulate(p, g)

    # Ragged final chunk: mask OOB rows (use where, not multiply, so stale
    # NaN/Inf garbage in the padded region cannot leak in).
    @pl.when(jnp.logical_and(valid > 0, valid < rows_per_block))
    def _():
        rows = jax.lax.broadcasted_iota(jnp.int32, (rows_per_block, _LANE), 0)
        keep = rows < valid
        accumulate(jnp.where(keep, p, 0.0), jnp.where(keep, g, 0.0))
    # Fully out-of-bounds cells (padding of the rectangular grid) fall through
    # both branches and contribute nothing.


def dice_loss(score_map_pred, score_map_gt, *, num_splits=None):
    """Pallas implementation of DiceLoss.forward for (B, N) inputs."""
    assert score_map_pred.shape == score_map_gt.shape
    assert score_map_pred.ndim == 2
    B, N = score_map_pred.shape
    dtype = score_map_pred.dtype
    itemsize = jnp.dtype(dtype).itemsize
    quantum = _sublane_quantum(dtype)

    # ---- lane alignment: free re-view when N % 128 == 0 (common case) ------
    if N % _LANE != 0:
        # Rare fallback: minimal pad to the next lane multiple (zeros are
        # neutral for both sums).
        # TODO(synk): manual-DMA tail handling to avoid this copy entirely.
        pad = _LANE - (N % _LANE)
        score_map_pred = jnp.pad(score_map_pred, ((0, 0), (0, pad)))
        score_map_gt = jnp.pad(score_map_gt, ((0, 0), (0, pad)))
    R = score_map_pred.shape[1] // _LANE
    pred3 = score_map_pred.reshape(B, R, _LANE)   # zero-copy row-major re-view
    gt3 = score_map_gt.reshape(B, R, _LANE)

    # ---- generation-aware knobs --------------------------------------------
    if num_splits is None:
        num_splits = _num_tensorcores()           # 2 on v7x, 1 on v5e/v6e
    vmem_cap = _vmem_capacity_bytes()
    vmem_limit = max(32 * _MIB, min(vmem_cap // 2, 64 * _MIB))

    # ---- byte-based block sizing -------------------------------------------
    pipe_budget = min(16 * _MIB, vmem_limit // 2)        # 2 inputs x 2 buffers
    r_from_vmem = pipe_budget // (2 * 2 * _LANE * itemsize)
    r_from_traffic = (4 * _MIB) // (2 * _LANE * itemsize)  # >=4 MiB HBM / step
    r_cap = max(quantum, min(r_from_vmem, r_from_traffic))

    if R < quantum:
        num_splits = 1
        rows_per_block = R                         # == full dim -> legal block
    else:
        num_splits = max(1, min(num_splits, R // quantum))
        rows_per_split = -(-R // num_splits)
        rows_per_block = min(r_cap, rows_per_split)
        rows_per_block = (rows_per_block // quantum) * quantum
    chunks_total = -(-R // rows_per_block)
    chunks_per_split = -(-chunks_total // num_splits)

    def in_map(b, s, j):
        # Clamp grid-padding cells to a valid block (their compute is skipped).
        c = jnp.minimum(s * chunks_per_split + j, chunks_total - 1)
        return (b, c, 0)

    def out_map(b, s, j):
        return (b, s, 0, 0)

    kernel = functools.partial(
        _dice_partial_kernel,
        rows_total=R,
        rows_per_block=rows_per_block,
        chunks_per_split=chunks_per_split)

    inter_part, union_part = pl.pallas_call(
        kernel,
        out_shape=(
            jax.ShapeDtypeStruct((B, num_splits, 1, _LANE), jnp.float32),
            jax.ShapeDtypeStruct((B, num_splits, 1, _LANE), jnp.float32),
        ),
        grid_spec=pltpu.PrefetchScalarGridSpec(
            num_scalar_prefetch=0,
            grid=(B, num_splits, chunks_per_split),
            in_specs=[
                pl.BlockSpec((1, rows_per_block, _LANE), in_map),
                pl.BlockSpec((1, rows_per_block, _LANE), in_map),
            ],
            out_specs=[
                pl.BlockSpec((1, 1, 1, _LANE), out_map),
                pl.BlockSpec((1, 1, 1, _LANE), out_map),
            ],
        ),
        compiler_params=pltpu.CompilerParams(
            dimension_semantics=("parallel", "parallel", "arbitrary"),
            vmem_limit_bytes=int(vmem_limit),
        ),
        cost_estimate=pl.CostEstimate(
            flops=4 * B * R * _LANE,
            transcendentals=0,
            bytes_accessed=2 * B * R * _LANE * itemsize,
        ),
    )(pred3, gt3)

    # O(B) finalize in plain JAX: combine lane/split partials -> dice -> mean.
    eps = jnp.float32(1e-5)
    intersection = jnp.sum(inter_part, axis=(1, 2, 3))   # (B,)
    union = jnp.sum(union_part, axis=(1, 2, 3))          # (B,)
    dice = 1.0 - (2.0 * intersection + eps) / (union + eps)
    return jnp.mean(dice)


def _dice_loss_ref(pred, gt):
    eps = 1e-5
    intersection = jnp.sum(pred * gt, axis=1)
    union = jnp.sum(pred, axis=1) + jnp.sum(gt, axis=1)
    return jnp.mean(1.0 - (2.0 * intersection + eps) / (union + eps))


if __name__ == "__main__":
    key = jax.random.PRNGKey(0)
    k1, k2, k3, k4 = jax.random.split(key, 4)

    # Primary check: batch=2, 16x16 score maps flattened to N=256 (dim=1).
    B, H, W = 2, 16, 16
    pred = jax.nn.sigmoid(jax.random.normal(k1, (B, H * W), dtype=jnp.float32))
    gt = (jax.random.uniform(k2, (B, H * W), dtype=jnp.float32) > 0.5).astype(
        jnp.float32)
    loss = dice_loss(pred, gt)
    jax.block_until_ready(loss)
    ref = _dice_loss_ref(pred, gt)
    assert jnp.allclose(loss, ref, atol=2e-5, rtol=1e-4), (loss, ref)

    # Secondary check: exercises the ragged row-chunk masking path (R=10).
    B2, N2 = 3, 1280
    pred2 = jax.nn.sigmoid(jax.random.normal(k3, (B2, N2), dtype=jnp.float32))
    gt2 = (jax.random.uniform(k4, (B2, N2), dtype=jnp.float32) > 0.5).astype(
        jnp.float32)
    loss2 = dice_loss(pred2, gt2)
    jax.block_until_ready(loss2)
    ref2 = _dice_loss_ref(pred2, gt2)
    assert jnp.allclose(loss2, ref2, atol=2e-5, rtol=1e-4), (loss2, ref2)

    print("KERNEL_OK")
</pallas_src>

<mosaic_0001>
module attributes {stable_mosaic.version = 11 : i64} {
  func.func @_dice_partial_kernel(%arg0: i32, %arg1: i32, %arg2: i32, %arg3: memref<1x2x128xf32, #tpu.memory_space<vmem>>, %arg4: memref<1x2x128xf32, #tpu.memory_space<vmem>>, %arg5: memref<1x1x1x128xf32, #tpu.memory_space<vmem>>, %arg6: memref<1x1x1x128xf32, #tpu.memory_space<vmem>>) attributes {dimension_semantics = [#tpu.dimension_semantics<parallel>, #tpu.dimension_semantics<parallel>, #tpu.dimension_semantics<arbitrary>], iteration_bounds = array<i64: 2, 1, 1>, scalar_prefetch = 0 : i64, scratch_operands = 0 : i64, tpu.core_type = #tpu.core_type<tc>, window_params = [{transform_indices = @transform_0, window_bounds = array<i64: 1, 2, 128>}, {transform_indices = @transform_1, window_bounds = array<i64: 1, 2, 128>}, {transform_indices = @transform_2, window_bounds = array<i64: 1, 1, 1, 128>}, {transform_indices = @transform_3, window_bounds = array<i64: 1, 1, 1, 128>}]} {
    %c0_i32 = arith.constant 0 : i32
    %0 = arith.cmpi eq, %arg2, %c0_i32 : i32
    %1 = arith.extui %0 : i1 to i32
    %c0_i32_0 = arith.constant 0 : i32
    %2 = arith.cmpi ne, %1, %c0_i32_0 : i32
    scf.if %2 {
      %cst = arith.constant 0.000000e+00 : f32
      %19 = vector.broadcast %cst : f32 to vector<1x1x1x128xf32>
      %c0_12 = arith.constant 0 : index
      %c0_13 = arith.constant 0 : index
      %c0_14 = arith.constant 0 : index
      %c0_15 = arith.constant 0 : index
      %20 = vector.load %arg5[%c0_12, %c0_13, %c0_14, %c0_15] : memref<1x1x1x128xf32, #tpu.memory_space<vmem>>, vector<1x1x1x128xf32>
      tpu.vector_store %arg5[%c0_12, %c0_13, %c0_14, %c0_15], %19 {strides = array<i32>} : memref<1x1x1x128xf32, #tpu.memory_space<vmem>>, vector<1x1x1x128xf32>,
      %cst_16 = arith.constant 0.000000e+00 : f32
      %21 = vector.broadcast %cst_16 : f32 to vector<1x1x1x128xf32>
      %c0_17 = arith.constant 0 : index
      %c0_18 = arith.constant 0 : index
      %c0_19 = arith.constant 0 : index
      %c0_20 = arith.constant 0 : index
      %22 = vector.load %arg6[%c0_17, %c0_18, %c0_19, %c0_20] : memref<1x1x1x128xf32, #tpu.memory_space<vmem>>, vector<1x1x1x128xf32>
      tpu.vector_store %arg6[%c0_17, %c0_18, %c0_19, %c0_20], %21 {strides = array<i32>} : memref<1x1x1x128xf32, #tpu.memory_space<vmem>>, vector<1x1x1x128xf32>,
    } else {
    }
    %c1_i32 = arith.constant 1 : i32
    %3 = arith.muli %arg1, %c1_i32 : i32
    %4 = arith.addi %3, %arg2 : i32
    %c2_i32 = arith.constant 2 : i32
    %5 = arith.muli %4, %c2_i32 : i32
    %c2_i32_1 = arith.constant 2 : i32
    %6 = arith.subi %c2_i32_1, %5 : i32
    %c0 = arith.constant 0 : index
    %c0_2 = arith.constant 0 : index
    %c0_3 = arith.constant 0 : index
    %7 = vector.load %arg3[%c0, %c0_2, %c0_3] : memref<1x2x128xf32, #tpu.memory_space<vmem>>, vector<1x2x128xf32>
    %8 = vector.shape_cast %7 : vector<1x2x128xf32> to vector<2x128xf32>
    %c0_4 = arith.constant 0 : index
    %c0_5 = arith.constant 0 : index
    %c0_6 = arith.constant 0 : index
    %9 = vector.load %arg4[%c0_4, %c0_5, %c0_6] : memref<1x2x128xf32, #tpu.memory_space<vmem>>, vector<1x2x128xf32>
    %10 = vector.shape_cast %9 : vector<1x2x128xf32> to vector<2x128xf32>
    %c2_i32_7 = arith.constant 2 : i32
    %11 = arith.cmpi sge, %6, %c2_i32_7 : i32
    %12 = arith.extui %11 : i1 to i32
    %c0_i32_8 = arith.constant 0 : i32
    %13 = arith.cmpi ne, %12, %c0_i32_8 : i32
    scf.if %13 {
      %c0_12 = arith.constant 0 : index
      %c0_13 = arith.constant 0 : index
      %c0_14 = arith.constant 0 : index
      %c0_15 = arith.constant 0 : index
      %19 = vector.load %arg5[%c0_12, %c0_13, %c0_14, %c0_15] : memref<1x1x1x128xf32, #tpu.memory_space<vmem>>, vector<1x1x1x128xf32>
      %20 = arith.mulf %8, %10 : vector<2x128xf32>
      %cst = arith.constant dense<0.000000e+00> : vector<128xf32>
      %21 = vector.multi_reduction <add>, %20, %cst [0] : vector<2x128xf32> to vector<128xf32>
      %22 = vector.shape_cast %21 : vector<128xf32> to vector<1x128xf32>
      %23 = vector.shape_cast %22 : vector<1x128xf32> to vector<1x1x1x128xf32>
      %24 = arith.addf %19, %23 : vector<1x1x1x128xf32>
      %c0_16 = arith.constant 0 : index
      %c0_17 = arith.constant 0 : index
      %c0_18 = arith.constant 0 : index
      %c0_19 = arith.constant 0 : index
      %25 = vector.load %arg5[%c0_16, %c0_17, %c0_18, %c0_19] : memref<1x1x1x128xf32, #tpu.memory_space<vmem>>, vector<1x1x1x128xf32>
      tpu.vector_store %arg5[%c0_16, %c0_17, %c0_18, %c0_19], %24 {strides = array<i32>} : memref<1x1x1x128xf32, #tpu.memory_space<vmem>>, vector<1x1x1x128xf32>,
      %c0_20 = arith.constant 0 : index
      %c0_21 = arith.constant 0 : index
      %c0_22 = arith.constant 0 : index
      %c0_23 = arith.constant 0 : index
      %26 = vector.load %arg6[%c0_20, %c0_21, %c0_22, %c0_23] : memref<1x1x1x128xf32, #tpu.memory_space<vmem>>, vector<1x1x1x128xf32>
      %27 = arith.addf %8, %10 : vector<2x128xf32>
      %cst_24 = arith.constant dense<0.000000e+00> : vector<128xf32>
      %28 = vector.multi_reduction <add>, %27, %cst_24 [0] : vector<2x128xf32> to vector<128xf32>
      %29 = vector.shape_cast %28 : vector<128xf32> to vector<1x128xf32>
      %30 = vector.shape_cast %29 : vector<1x128xf32> to vector<1x1x1x128xf32>
      %31 = arith.addf %26, %30 : vector<1x1x1x128xf32>
      %c0_25 = arith.constant 0 : index
      %c0_26 = arith.constant 0 : index
      %c0_27 = arith.constant 0 : index
      %c0_28 = arith.constant 0 : index
      %32 = vector.load %arg6[%c0_25, %c0_26, %c0_27, %c0_28] : memref<1x1x1x128xf32, #tpu.memory_space<vmem>>, vector<1x1x1x128xf32>
      tpu.vector_store %arg6[%c0_25, %c0_26, %c0_27, %c0_28], %31 {strides = array<i32>} : memref<1x1x1x128xf32, #tpu.memory_space<vmem>>, vector<1x1x1x128xf32>,
    } else {
    }
    %c0_i32_9 = arith.constant 0 : i32
    %14 = arith.cmpi sgt, %6, %c0_i32_9 : i32
    %c2_i32_10 = arith.constant 2 : i32
    %15 = arith.cmpi slt, %6, %c2_i32_10 : i32
    %16 = arith.andi %14, %15 : i1
    %17 = arith.extui %16 : i1 to i32
    %c0_i32_11 = arith.constant 0 : i32
    %18 = arith.cmpi ne, %17, %c0_i32_11 : i32
    scf.if %18 {
      %19 = tpu.iota {dimensions = array<i32: 0>} : vector<2x128xi32>
      %20 = vector.broadcast %6 : i32 to vector<2x128xi32>
      %21 = arith.cmpi slt, %19, %20 : vector<2x128xi32>
      %cst = arith.constant 0.000000e+00 : f32
      %22 = vector.broadcast %cst : f32 to vector<2x128xf32>
      %23 = arith.select %21, %8, %22 : vector<2x128xi1>, vector<2x128xf32>
      %cst_12 = arith.constant 0.000000e+00 : f32
      %24 = vector.broadcast %cst_12 : f32 to vector<2x128xf32>
      %25 = arith.select %21, %10, %24 : vector<2x128xi1>, vector<2x128xf32>
      %c0_13 = arith.constant 0 : index
      %c0_14 = arith.constant 0 : index
      %c0_15 = arith.constant 0 : index
      %c0_16 = arith.constant 0 : index
      %26 = vector.load %arg5[%c0_13, %c0_14, %c0_15, %c0_16] : memref<1x1x1x128xf32, #tpu.memory_space<vmem>>, vector<1x1x1x128xf32>
      %27 = arith.mulf %23, %25 : vector<2x128xf32>
      %cst_17 = arith.constant dense<0.000000e+00> : vector<128xf32>
      %28 = vector.multi_reduction <add>, %27, %cst_17 [0] : vector<2x128xf32> to vector<128xf32>
      %29 = vector.shape_cast %28 : vector<128xf32> to vector<1x128xf32>
      %30 = vector.shape_cast %29 : vector<1x128xf32> to vector<1x1x1x128xf32>
      %31 = arith.addf %26, %30 : vector<1x1x1x128xf32>
      %c0_18 = arith.constant 0 : index
      %c0_19 = arith.constant 0 : index
      %c0_20 = arith.constant 0 : index
      %c0_21 = arith.constant 0 : index
      %32 = vector.load %arg5[%c0_18, %c0_19, %c0_20, %c0_21] : memref<1x1x1x128xf32, #tpu.memory_space<vmem>>, vector<1x1x1x128xf32>
      tpu.vector_store %arg5[%c0_18, %c0_19, %c0_20, %c0_21], %31 {strides = array<i32>} : memref<1x1x1x128xf32, #tpu.memory_space<vmem>>, vector<1x1x1x128xf32>,
      %c0_22 = arith.constant 0 : index
      %c0_23 = arith.constant 0 : index
      %c0_24 = arith.constant 0 : index
      %c0_25 = arith.constant 0 : index
      %33 = vector.load %arg6[%c0_22, %c0_23, %c0_24, %c0_25] : memref<1x1x1x128xf32, #tpu.memory_space<vmem>>, vector<1x1x1x128xf32>
      %34 = arith.addf %23, %25 : vector<2x128xf32>
      %cst_26 = arith.constant dense<0.000000e+00> : vector<128xf32>
      %35 = vector.multi_reduction <add>, %34, %cst_26 [0] : vector<2x128xf32> to vector<128xf32>
      %36 = vector.shape_cast %35 : vector<128xf32> to vector<1x128xf32>
      %37 = vector.shape_cast %36 : vector<1x128xf32> to vector<1x1x1x128xf32>
      %38 = arith.addf %33, %37 : vector<1x1x1x128xf32>
      %c0_27 = arith.constant 0 : index
      %c0_28 = arith.constant 0 : index
      %c0_29 = arith.constant 0 : index
      %c0_30 = arith.constant 0 : index
      %39 = vector.load %arg6[%c0_27, %c0_28, %c0_29, %c0_30] : memref<1x1x1x128xf32, #tpu.memory_space<vmem>>, vector<1x1x1x128xf32>
      tpu.vector_store %arg6[%c0_27, %c0_28, %c0_29, %c0_30], %38 {strides = array<i32>} : memref<1x1x1x128xf32, #tpu.memory_space<vmem>>, vector<1x1x1x128xf32>,
    } else {
    }
    return
  }
  func.func @transform_0(%arg0: i32, %arg1: i32, %arg2: i32) -> (i32, i32, i32) {
    %c1_i32 = arith.constant 1 : i32
    %0 = arith.muli %arg1, %c1_i32 : i32
    %1 = arith.addi %0, %arg2 : i32
    %c0_i32 = arith.constant 0 : i32
    %2 = arith.minsi %1, %c0_i32 : i32
    %c0_i32_0 = arith.constant 0 : i32
    %c0_i32_1 = arith.constant 0 : i32
    return %arg0, %2, %c0_i32_0 : i32, i32, i32
  }
  func.func @transform_1(%arg0: i32, %arg1: i32, %arg2: i32) -> (i32, i32, i32) {
    %c1_i32 = arith.constant 1 : i32
    %0 = arith.muli %arg1, %c1_i32 : i32
    %1 = arith.addi %0, %arg2 : i32
    %c0_i32 = arith.constant 0 : i32
    %2 = arith.minsi %1, %c0_i32 : i32
    %c0_i32_0 = arith.constant 0 : i32
    %c0_i32_1 = arith.constant 0 : i32
    return %arg0, %2, %c0_i32_0 : i32, i32, i32
  }
  func.func @transform_2(%arg0: i32, %arg1: i32, %arg2: i32) -> (i32, i32, i32, i32) {
    %c0_i32 = arith.constant 0 : i32
    %c0_i32_0 = arith.constant 0 : i32
    %c0_i32_1 = arith.constant 0 : i32
    return %arg0, %arg1, %c0_i32, %c0_i32_0 : i32, i32, i32, i32
  }
  func.func @transform_3(%arg0: i32, %arg1: i32, %arg2: i32) -> (i32, i32, i32, i32) {
    %c0_i32 = arith.constant 0 : i32
    %c0_i32_0 = arith.constant 0 : i32
    %c0_i32_1 = arith.constant 0 : i32
    return %arg0, %arg1, %c0_i32, %c0_i32_0 : i32, i32, i32, i32
  }
}

</mosaic_0001>

<llo_original>
// kernel: tpu_custom_call.1
$region0: #{tpu_custom_call.1}
  #allocation0 [shape = 'u32[]', space=smem, size = 0x4, offset = 0x4, fixed_abs, tag = 'smem constant byte address 0x4 - core index']
  #allocation1 [shape = 'u32[144,128]{1,0:T(1,128)}', space=vmem, size = 0x12000, scoped, tag = 'internal scratch']
  %s0 = inlined_call_operand.hbm [shape: f32[2,2,128], index: 0, kind: input, shape index: {}]
  %s1 = inlined_call_operand.hbm [shape: f32[2,2,128], index: 1, kind: input, shape index: {}]
  %s2 = inlined_call_operand.hbm [shape: f32[2,1,1,128], index: 2, kind: output, shape index: {0}]
  %s3 = inlined_call_operand.hbm [shape: f32[2,1,1,128], index: 3, kind: output, shape index: {1}]
  %4 = xla_tuple %s2, %s3
  %s5 = sld [smem:[#allocation0]]
  $region69: #{tpu_custom_call.1} parent=0
    _
  %s7 = ssub.s32 1, %s5
  %s8 = scalar_select 0, %s7, %s5
  $region1: #{tpu_custom_call.1} parent=0
    #allocation2 [shape = 'u8[2048]{0}', space=vmem, size = 0x800, scoped, tag = 'input window, operand 0']
    #allocation3 [shape = 's32[2]{0}', space=sflag, size = 0x8, scoped, tag = 'scoped memory for tpu_custom_call.1']
    #allocation4 [shape = 's32[2]{0}', space=sflag, size = 0x8, scoped, tag = 'scoped memory for tpu_custom_call.1']
    #allocation5 [shape = 'u8[2048]{0}', space=vmem, size = 0x800, scoped, tag = 'input window, operand 1']
    #allocation6 [shape = 's32[2]{0}', space=sflag, size = 0x8, scoped, tag = 'scoped memory for tpu_custom_call.1']
    #allocation7 [shape = 'u8[1024]{0}', space=vmem, size = 0x400, scoped, tag = 'output window, operand 0']
    #allocation8 [shape = 'u8[1024]{0}', space=vmem, size = 0x400, scoped, tag = 'output window, operand 1']
    #allocation9 [shape = 's32[2]{0}', space=sflag, size = 0x8, scoped, tag = 'scoped memory for tpu_custom_call.1']
    %9 = vsyncpa [#allocation3], 0
    %s10 = scalar_lea.sflag [#allocation3], 1
    %11 = vsyncpa %s10, 0
    %12 = vsyncpa [#allocation6], 0
    %s13 = scalar_lea.sflag [#allocation6], 1
    %14 = vsyncpa %s13, 0
    %15 = vsyncpa [#allocation4], 0
    %s16 = scalar_lea.sflag [#allocation4], 1
    %17 = vsyncpa %s16, 0
    %18 = vsyncpa [#allocation9], 0
    %s19 = scalar_lea.sflag [#allocation9], 1
    %20 = vsyncpa %s19, 0
    loop: start=0, step=1, limit=4
    $region2: #{tpu_custom_call.1} parent=1 // loop_pre_header
      _
    $region3: #{tpu_custom_call.1} parent=1 // loop_header
      %s22 = sphi 0, %s26
      %p23 = scmp.ge.s32.totalorder %s22, 4
      %s29 = sphi 0, %s48
      %s30 = sphi 0, %s44
      %s31 = sphi 0, %s40
      %s32 = sphi 0, %s29
      %s33 = sphi 0, %s30
      %s34 = sphi 0, %s31
      %s35 = sphi 0, %s32
      %s36 = sphi 0, %s33
      %s37 = sphi 0, %s34
      %s59 = sphi 0, %s61
      %s62 = sphi 0, %s59
      %s63 = sphi 0, %s62
      %s79 = sphi 0, %s63
      %s93 = sphi 0, %s95
      %s96 = sphi 0, %s93
      %s97 = sphi 0, %s96
      %s113 = sphi 0, %s97
      %s121 = sphi 0, %s123
      %s124 = sphi 0, %s121
      %s125 = sphi 0, %s124
      %s141 = sphi 0, %s125
      %s149 = sphi 0, %s151
      %s152 = sphi 0, %s149
      %s153 = sphi 0, %s152
      %s169 = sphi 0, %s153
    $region4: #{tpu_custom_call.1} parent=1 // loop_header_branch
      %25 = sbr.rel (%p23) target = $region8
    $region5: #{tpu_custom_call.1} parent=1 // loop_body
      %s27 = ssub.s32 %s22, 1
      %s28 = ssub.s32 %s22, 2
      %s38 = sadd.s32 1, %s31
      %p39 = scmp.ge.s32.totalorder %s38, 1
      %s40 = scalar_select %p39, 0, %s38
      %s41 = sadd.s32 1, %s30
      %s42 = scalar_select %p39, %s41, %s30
      %p43 = scmp.ge.s32.totalorder %s42, 1
      %s44 = scalar_select %p43, 0, %s42
      %s45 = sadd.s32 1, %s29
      %s46 = scalar_select %p43, %s45, %s29
      %p47 = scmp.ge.s32.totalorder %s46, 2
      %s48 = scalar_select %p47, 0, %s46
      %s49 = sadd.s32 %s30, %s31
      %p50 = scmp.lt.s32.totalorder %s49, 0
      %s51 = scalar_select %p50, %s49, 0
      %s52 = sadd.s32 %s44, %s40
      %p53 = scmp.lt.s32.totalorder %s52, 0
      %s54 = scalar_select %p53, %s52, 0
      %s55 = ssub.s32 %s29, %s48
      %s56 = ssub.s32 %s51, %s54
      %s57 = sor.u32 %s55, %s56
      %p58 = scmp.eq.s32.totalorder %s57, 0
      %s60 = sadd.s32 %s59, 1
      %s61 = scalar_select %p58, %s59, %s60
      %p64 = pneg %p58
      %p65 = scmp.eq.s32.totalorder %s22, 1
      %p66 = por %p64, %p65
      %p67 = scmp.ne.s32.totalorder %s59, %s62
      %p68 = scmp.eq.s32.totalorder %s22, 0
      %p69 = por %p67, %p68
      %p70 = scmp.ne.s32.totalorder %s59, %s62
      %p71 = scmp.eq.s32.totalorder %s27, 1
      %p72 = por %p70, %p71
      %p73 = scmp.ne.s32.totalorder %s62, %s63
      %p74 = scmp.eq.s32.totalorder %s27, 0
      %p75 = por %p73, %p74
      %p76 = scmp.ne.s32.totalorder %s62, %s63
      %p77 = scmp.eq.s32.totalorder %s28, 1
      %p78 = por %p76, %p77
      %p80 = scmp.ne.s32.totalorder %s63, %s79
      %p81 = scmp.eq.s32.totalorder %s28, 0
      %p82 = por %p80, %p81
      %s83 = sadd.s32 %s30, %s31
      %p84 = scmp.lt.s32.totalorder %s83, 0
      %s85 = scalar_select %p84, %s83, 0
      %s86 = sadd.s32 %s44, %s40
      %p87 = scmp.lt.s32.totalorder %s86, 0
      %s88 = scalar_select %p87, %s86, 0
      %s89 = ssub.s32 %s29, %s48
      %s90 = ssub.s32 %s85, %s88
      %s91 = sor.u32 %s89, %s90
      %p92 = scmp.eq.s32.totalorder %s91, 0
      %s94 = sadd.s32 %s93, 1
      %s95 = scalar_select %p92, %s93, %s94
      %p98 = pneg %p92
      %p99 = scmp.eq.s32.totalorder %s22, 1
      %p100 = por %p98, %p99
      %p101 = scmp.ne.s32.totalorder %s93, %s96
      %p102 = scmp.eq.s32.totalorder %s22, 0
      %p103 = por %p101, %p102
      %p104 = scmp.ne.s32.totalorder %s93, %s96
      %p105 = scmp.eq.s32.totalorder %s27, 1
      %p106 = por %p104, %p105
      %p107 = scmp.ne.s32.totalorder %s96, %s97
      %p108 = scmp.eq.s32.totalorder %s27, 0
      %p109 = por %p107, %p108
      %p110 = scmp.ne.s32.totalorder %s96, %s97
      %p111 = scmp.eq.s32.totalorder %s28, 1
      %p112 = por %p110, %p111
      %p114 = scmp.ne.s32.totalorder %s97, %s113
      %p115 = scmp.eq.s32.totalorder %s28, 0
      %p116 = por %p114, %p115
      %s117 = ssub.s32 %s29, %s48
      %s118 = ssub.s32 %s30, %s44
      %s119 = sor.u32 %s117, %s118
      %p120 = scmp.eq.s32.totalorder %s119, 0
      %s122 = sadd.s32 %s121, 1
      %s123 = scalar_select %p120, %s121, %s122
      %p126 = pneg %p120
      %p127 = scmp.eq.s32.totalorder %s22, 1
      %p128 = por %p126, %p127
      %p129 = scmp.ne.s32.totalorder %s121, %s124
      %p130 = scmp.eq.s32.totalorder %s22, 0
      %p131 = por %p129, %p130
      %p132 = scmp.ne.s32.totalorder %s121, %s124
      %p133 = scmp.eq.s32.totalorder %s27, 1
      %p134 = por %p132, %p133
      %p135 = scmp.ne.s32.totalorder %s124, %s125
      %p136 = scmp.eq.s32.totalorder %s27, 0
      %p137 = por %p135, %p136
      %p138 = scmp.ne.s32.totalorder %s124, %s125
      %p139 = scmp.eq.s32.totalorder %s28, 1
      %p140 = por %p138, %p139
      %p142 = scmp.ne.s32.totalorder %s125, %s141
      %p143 = scmp.eq.s32.totalorder %s28, 0
      %p144 = por %p142, %p143
      %s145 = ssub.s32 %s29, %s48
      %s146 = ssub.s32 %s30, %s44
      %s147 = sor.u32 %s145, %s146
      %p148 = scmp.eq.s32.totalorder %s147, 0
      %s150 = sadd.s32 %s149, 1
      %s151 = scalar_select %p148, %s149, %s150
      %p154 = pneg %p148
      %p155 = scmp.eq.s32.totalorder %s22, 1
      %p156 = por %p154, %p155
      %p157 = scmp.ne.s32.totalorder %s149, %s152
      %p158 = scmp.eq.s32.totalorder %s22, 0
      %p159 = por %p157, %p158
      %p160 = scmp.ne.s32.totalorder %s149, %s152
      %p161 = scmp.eq.s32.totalorder %s27, 1
      %p162 = por %p160, %p161
      %p163 = scmp.ne.s32.totalorder %s152, %s153
      %p164 = scmp.eq.s32.totalorder %s27, 0
      %p165 = por %p163, %p164
      %p166 = scmp.ne.s32.totalorder %s152, %s153
      %p167 = scmp.eq.s32.totalorder %s28, 1
      %p168 = por %p166, %p167
      %p170 = scmp.ne.s32.totalorder %s153, %s169
      %p171 = scmp.eq.s32.totalorder %s28, 0
      %p172 = por %p170, %p171
      %p173 = scmp.le.s32.totalorder 1, %s22
      %p174 = scmp.lt.s32.totalorder %s22, 3
      %p175 = pnand %p173, %p174
      %p176 = pneg %p175
      // Predicated region
      $region9: #{tpu_custom_call.1} parent=5 // pred_check
        _
      $region10: #{tpu_custom_call.1} parent=5 // pred_check_branch
        %178 = sbr.rel (%p175) target = $region12
      $region11: #{tpu_custom_call.1} parent=5 // pred_region
        %s179 = ssub.s32 %s22, 1
      $region12: #{tpu_custom_call.1} parent=5 // pred_fallthru
        _
      %p180 = scmp.lt.s32.totalorder %s22, 2
      // Predicated region
      $region13: #{tpu_custom_call.1} parent=5 // pred_check
        %p181 = pneg %p180
      $region14: #{tpu_custom_call.1} parent=5 // pred_check_branch
        %183 = sbr.rel (%p181) target = $region16
      $region15: #{tpu_custom_call.1} parent=5 // pred_region
        // Predicated region
        $region17: #{tpu_custom_call.1} parent=15 // pred_check
          %p184 = pneg %p69
        $region18: #{tpu_custom_call.1} parent=15 // pred_check_branch
          %186 = sbr.rel (%p184) target = $region20
        $region19: #{tpu_custom_call.1} parent=15 // pred_region
          %s187 = sand.u32 %s59, 1
          %s188 = scalar_lea.sflag [#allocation3], %s187
          %s189 = sand.u32 %s59, 1
          %s190 = smul.addr %s189, 2
          %s191 = scalar_lea.vmem [#allocation2], %s190
          %s192 = sadd.s32 %s30, %s31
          %p193 = scmp.lt.s32.totalorder %s192, 0
          %s194 = scalar_select %p193, %s192, 0
          %s196 = ssub.s32 32, 32
          %197 = vsyncadd %s188, %s196
          %s198 = sadd.s32 %s194, %s29
          %s199 = smul.addr %s198, 32
          %s200 = scalar_lea.hbm %s0, %s199
          %s202 = sshll.u32 %s191, 4
          %s203 = int_to_ptr.vmem [resolvable:$true] %s202
          %205 = dma.hbm_to_vmem [thread:$0]  %s200, 32, %s203, %s188
        $region20: #{tpu_custom_call.1} parent=15 // pred_fallthru
          _
        // Predicated region
        $region21: #{tpu_custom_call.1} parent=15 // pred_check
          %p206 = pneg %p103
        $region22: #{tpu_custom_call.1} parent=15 // pred_check_branch
          %208 = sbr.rel (%p206) target = $region24
        $region23: #{tpu_custom_call.1} parent=15 // pred_region
          %s209 = sand.u32 %s93, 1
          %s210 = scalar_lea.sflag [#allocation6], %s209
          %s211 = sand.u32 %s93, 1
          %s212 = smul.addr %s211, 2
          %s213 = scalar_lea.vmem [#allocation5], %s212
          %s214 = sadd.s32 %s30, %s31
          %p215 = scmp.lt.s32.totalorder %s214, 0
          %s216 = scalar_select %p215, %s214, 0
          %s218 = ssub.s32 32, 32
          %219 = vsyncadd %s210, %s218
          %s220 = sadd.s32 %s216, %s29
          %s221 = smul.addr %s220, 32
          %s222 = scalar_lea.hbm %s1, %s221
          %s224 = sshll.u32 %s213, 4
          %s225 = int_to_ptr.vmem [resolvable:$true] %s224
          %227 = dma.hbm_to_vmem [thread:$0]  %s222, 32, %s225, %s210
        $region24: #{tpu_custom_call.1} parent=15 // pred_fallthru
          _
      $region16: #{tpu_custom_call.1} parent=5 // pred_fallthru
        _
      %p228 = scmp.le.s32.totalorder 1, %s22
      %p229 = scmp.lt.s32.totalorder %s22, 3
      %p230 = pnand %p228, %p229
      %p231 = pneg %p230
      // Predicated region
      $region25: #{tpu_custom_call.1} parent=5 // pred_check
        _
      $region26: #{tpu_custom_call.1} parent=5 // pred_check_branch
        %233 = sbr.rel (%p230) target = $region28
      $region27: #{tpu_custom_call.1} parent=5 // pred_region
        %s234 = ssub.s32 %s22, 1
        %s235 = sand.u32 %s62, 1
        %s236 = scalar_lea.sflag [#allocation3], %s235
        %s237 = sand.u32 %s62, 1
        %s238 = smul.addr %s237, 2
        %s239 = scalar_lea.vmem [#allocation2], %s238
        // Predicated region
        $region29: #{tpu_custom_call.1} parent=27 // pred_check
          %p240 = pneg %p75
        $region30: #{tpu_custom_call.1} parent=27 // pred_check_branch
          %242 = sbr.rel (%p240) target = $region32
        $region31: #{tpu_custom_call.1} parent=27 // pred_region
          %243 = dma.done %s236, 32
        $region32: #{tpu_custom_call.1} parent=27 // pred_fallthru
          _
        %s244 = sand.u32 %s96, 1
        %s245 = scalar_lea.sflag [#allocation6], %s244
        %s246 = sand.u32 %s96, 1
        %s247 = smul.addr %s246, 2
        %s248 = scalar_lea.vmem [#allocation5], %s247
        // Predicated region
        $region33: #{tpu_custom_call.1} parent=27 // pred_check
          %p249 = pneg %p109
        $region34: #{tpu_custom_call.1} parent=27 // pred_check_branch
          %251 = sbr.rel (%p249) target = $region36
        $region35: #{tpu_custom_call.1} parent=27 // pred_region
          %252 = dma.done %s245, 32
        $region36: #{tpu_custom_call.1} parent=27 // pred_fallthru
          _
        %s253 = sand.u32 %s62, 1
        %s254 = scalar_lea.sflag [#allocation3], %s253
        %s255 = sand.u32 %s62, 1
        %s256 = smul.addr %s255, 2
        %s257 = scalar_lea.vmem [#allocation2], %s256
        %p258 = pneg %p75
        %p259 = pneg %p72
        %s260 = sand.u32 %s96, 1
        %s261 = scalar_lea.sflag [#allocation6], %s260
        %s262 = sand.u32 %s96, 1
        %s263 = smul.addr %s262, 2
        %s264 = scalar_lea.vmem [#allocation5], %s263
        %p265 = pneg %p109
        %p266 = pneg %p106
        %p267 = pneg %p137
        %p268 = pneg %p134
        %s269 = sand.u32 %s124, 1
        %s270 = scalar_lea.sflag [#allocation4], %s269
        %s271 = sand.u32 %s124, 1
        %s272 = scalar_lea.vmem [#allocation7], %s271
        %p273 = pneg %p165
        %p274 = pneg %p162
        %s275 = sand.u32 %s152, 1
        %s276 = scalar_lea.sflag [#allocation9], %s275
        %s277 = sand.u32 %s152, 1
        %s278 = scalar_lea.vmem [#allocation8], %s277
        %s279 = sadd.s32 %s33, %s34
        %p280 = scmp.lt.s32.totalorder %s279, 0
        %s281 = scalar_select %p280, %s279, 0
        %s282 = sadd.s32 %s33, %s34
        %p283 = scmp.lt.s32.totalorder %s282, 0
        %s284 = scalar_select %p283, %s282, 0
        %p285 = scmp.eq.s32.totalorder %s34, 0
        // Predicated region
        $region37: #{tpu_custom_call.1} parent=27 // pred_check
          %p286 = pneg %p285
        $region38: #{tpu_custom_call.1} parent=27 // pred_check_branch
          %288 = sbr.rel (%p286) target = $region40
        $region39: #{tpu_custom_call.1} parent=27 // pred_region
          %289 = vst [vmem:[%s272] sm:$0x1] 0.0
          %290 = vst [vmem:[%s278] sm:$0x1] 0.0
        $region40: #{tpu_custom_call.1} parent=27 // pred_fallthru
          _
        %s291 = sadd.s32 %s33, %s34
        %s292 = smul.u32 %s291, 2
        %s293 = ssub.s32 2, %s292
        %v294 = vld [vmem:[%s239] sm:$0x3]
        %v295 = vld [vmem:[%s248] sm:$0x3]
        %p296 = scmp.ge.s32.totalorder %s293, 2
        // Predicated region
        $region41: #{tpu_custom_call.1} parent=27 // pred_check
          %p297 = pneg %p296
        $region42: #{tpu_custom_call.1} parent=27 // pred_check_branch
          %299 = sbr.rel (%p297) target = $region44
        $region43: #{tpu_custom_call.1} parent=27 // pred_region
          %v300 = vld [vmem:[%s272] sm:$0x1]
          %v301 = vmul.f32 %v294, %v295
          %vm302 = vcmask 1041408
          %v303 = vsel %vm302, %v301, 0.0
          %v304 = vrot.slane %v303, 4
          %v305 = vadd.f32 %v303, %v304
          %v306 = vrot.slane %v305, 2
          %v307 = vadd.f32 %v305, %v306
          %v308 = vrot.slane %v307, 1
          %v309 = vadd.f32 %v307, %v308
          %v310 = vadd.f32 %v300, %v309
          %311 = vst [vmem:[%s272] sm:$0x1] %v310
          %v312 = vld [vmem:[%s278] sm:$0x1]
          %v313 = vadd.f32 %v294, %v295
          %v314 = vsel %vm302, %v313, 0.0
          %v315 = vrot.slane %v314, 4
          %v316 = vadd.f32 %v314, %v315
          %v317 = vrot.slane %v316, 2
          %v318 = vadd.f32 %v316, %v317
          %v319 = vrot.slane %v318, 1
          %v320 = vadd.f32 %v318, %v319
          %v321 = vadd.f32 %v312, %v320
          %322 = vst [vmem:[%s278] sm:$0x1] %v321
        $region44: #{tpu_custom_call.1} parent=27 // pred_fallthru
          _
        %p323 = scmp.gt.s32.totalorder %s293, 0
        %p324 = scmp.lt.s32.totalorder %s293, 2
        %p325 = pnand %p323, %p324
        %p326 = pneg %p325
        // Predicated region
        $region45: #{tpu_custom_call.1} parent=27 // pred_check
          _
        $region46: #{tpu_custom_call.1} parent=27 // pred_check_branch
          %328 = sbr.rel (%p325) target = $region48
        $region47: #{tpu_custom_call.1} parent=27 // pred_region
          %v329 = vlaneseq
          %v330 = vshrl.u32 %v329, 7
          %v331 = vstv %s293
          %vm332 = vcmp.lt.s32.totalorder %v330, %v331
          %v333 = vsel %vm332, %v294, 0.0
          %v334 = vsel %vm332, %v295, 0.0
          %v335 = vld [vmem:[%s272] sm:$0x1]
          %v336 = vmul.f32 %v333, %v334
          %vm337 = vcmask 1041408
          %v338 = vsel %vm337, %v336, 0.0
          %v339 = vrot.slane %v338, 4
          %v340 = vadd.f32 %v338, %v339
          %v341 = vrot.slane %v340, 2
          %v342 = vadd.f32 %v340, %v341
          %v343 = vrot.slane %v342, 1
          %v344 = vadd.f32 %v342, %v343
          %v345 = vadd.f32 %v335, %v344
          %346 = vst [vmem:[%s272] sm:$0x1] %v345
          %v347 = vld [vmem:[%s278] sm:$0x1]
          %v348 = vadd.f32 %v333, %v334
          %v349 = vsel %vm337, %v348, 0.0
          %v350 = vrot.slane %v349, 4
          %v351 = vadd.f32 %v349, %v350
          %v352 = vrot.slane %v351, 2
          %v353 = vadd.f32 %v351, %v352
          %v354 = vrot.slane %v353, 1
          %v355 = vadd.f32 %v353, %v354
          %v356 = vadd.f32 %v347, %v355
          %357 = vst [vmem:[%s278] sm:$0x1] %v356
        $region48: #{tpu_custom_call.1} parent=27 // pred_fallthru
          _
        %s358 = sand.u32 %s124, 1
        %s359 = scalar_lea.sflag [#allocation4], %s358
        %s360 = sand.u32 %s124, 1
        %s361 = scalar_lea.vmem [#allocation7], %s360
        %s362 = sand.u32 %s152, 1
        %s363 = scalar_lea.sflag [#allocation9], %s362
        %s364 = sand.u32 %s152, 1
        %s365 = scalar_lea.vmem [#allocation8], %s364
        // Predicated region
        $region49: #{tpu_custom_call.1} parent=27 // pred_check
          %p366 = pneg %p134
        $region50: #{tpu_custom_call.1} parent=27 // pred_check_branch
          %368 = sbr.rel (%p366) target = $region52
        $region51: #{tpu_custom_call.1} parent=27 // pred_region
          %s370 = ssub.s32 16, 16
          %371 = vsyncadd %s359, %s370
          %s372 = sadd.s32 %s33, %s32
          %s373 = smul.addr %s372, 16
          %s374 = scalar_lea.hbm %s2, %s373
          %s376 = sshll.u32 %s361, 4
          %s377 = int_to_ptr.vmem [resolvable:$true] %s376
          %379 = dma.vmem_to_hbm [thread:$0]  %s377, 16, %s374, %s359
        $region52: #{tpu_custom_call.1} parent=27 // pred_fallthru
          _
        // Predicated region
        $region53: #{tpu_custom_call.1} parent=27 // pred_check
          %p380 = pneg %p162
        $region54: #{tpu_custom_call.1} parent=27 // pred_check_branch
          %382 = sbr.rel (%p380) target = $region56
        $region55: #{tpu_custom_call.1} parent=27 // pred_region
          %s384 = ssub.s32 16, 16
          %385 = vsyncadd %s363, %s384
          %s386 = sadd.s32 %s33, %s32
          %s387 = smul.addr %s386, 16
          %s388 = scalar_lea.hbm %s3, %s387
          %s390 = sshll.u32 %s365, 4
          %s391 = int_to_ptr.vmem [resolvable:$true] %s390
          %393 = dma.vmem_to_hbm [thread:$0]  %s391, 16, %s388, %s363
        $region56: #{tpu_custom_call.1} parent=27 // pred_fallthru
          _
      $region28: #{tpu_custom_call.1} parent=5 // pred_fallthru
        _
      %p394 = scmp.le.s32.totalorder 2, %s22
      // Predicated region
      $region57: #{tpu_custom_call.1} parent=5 // pred_check
        %p395 = pneg %p394
      $region58: #{tpu_custom_call.1} parent=5 // pred_check_branch
        %397 = sbr.rel (%p395) target = $region60
      $region59: #{tpu_custom_call.1} parent=5 // pred_region
        %s398 = ssub.s32 %s22, 2
        // Predicated region
        $region61: #{tpu_custom_call.1} parent=59 // pred_check
          %p399 = pneg %p140
        $region62: #{tpu_custom_call.1} parent=59 // pred_check_branch
          %401 = sbr.rel (%p399) target = $region64
        $region63: #{tpu_custom_call.1} parent=59 // pred_region
          %s402 = sand.u32 %s125, 1
          %s403 = scalar_lea.sflag [#allocation4], %s402
          %s404 = sand.u32 %s125, 1
          %s405 = scalar_lea.vmem [#allocation7], %s404
          %406 = dma.done %s403, 16
        $region64: #{tpu_custom_call.1} parent=59 // pred_fallthru
          _
        // Predicated region
        $region65: #{tpu_custom_call.1} parent=59 // pred_check
          %p407 = pneg %p168
        $region66: #{tpu_custom_call.1} parent=59 // pred_check_branch
          %409 = sbr.rel (%p407) target = $region68
        $region67: #{tpu_custom_call.1} parent=59 // pred_region
          %s410 = sand.u32 %s153, 1
          %s411 = scalar_lea.sflag [#allocation9], %s410
          %s412 = sand.u32 %s153, 1
          %s413 = scalar_lea.vmem [#allocation8], %s412
          %414 = dma.done %s411, 16
        $region68: #{tpu_custom_call.1} parent=59 // pred_fallthru
          _
      $region60: #{tpu_custom_call.1} parent=5 // pred_fallthru
        _
    $region6: #{tpu_custom_call.1} parent=1 // loop_footer
      %s26 = sadd.s32 1, %s22
    $region7: #{tpu_custom_call.1} parent=1 // loop_footer_branch
      %21 = sbr.rel target = $region3
    $region8: #{tpu_custom_call.1} parent=1 // loop_exit
      _
    %415 = vsyncpa [#allocation3], 1
    %s416 = scalar_lea.sflag [#allocation3], 1
    %417 = vsyncpa %s416, 1
    %418 = vsyncpa [#allocation6], 1
    %s419 = scalar_lea.sflag [#allocation6], 1
    %420 = vsyncpa %s419, 1
    %421 = vsyncpa [#allocation4], 1
    %s422 = scalar_lea.sflag [#allocation4], 1
    %423 = vsyncpa %s422, 1
    %424 = vsyncpa [#allocation9], 1
    %s425 = scalar_lea.sflag [#allocation9], 1
    %426 = vsyncpa %s425, 1

</llo_original>
